<compile_context>
chip_gen: v5e
topology: v5e:2x2
jax: 0.10.0
libtpu: 0.0.40
codegen_flags: <defaults>
</compile_context>

<pallas_src>
import functools

import jax
import jax.numpy as jnp
from jax import lax
from jax.experimental import pallas as pl
from jax.experimental.pallas import tpu as pltpu


def _round_up(x, m):
    return ((x + m - 1) // m) * m


def _single_layer_nn_kernel(x_ref, w_ref, b_ref, logits_ref, probas_ref, *,
                            normalize):
    x = x_ref[...].astype(jnp.float32)                       # (TB, K)

    # Linear on the MXU with f32 accumulation.
    logits = jnp.dot(x, w_ref[...].astype(jnp.float32),
                     preferred_element_type=jnp.float32)     # (TB, N)

    if normalize:
        # (x / ||x||) @ W  ==  (x @ W) * rsqrt(sum(x*x))
        ss = jnp.sum(x * x, axis=-1, keepdims=True)          # (TB, 1)
        logits = logits * lax.rsqrt(ss)

    logits = logits + b_ref[...]
    logits_ref[...] = logits.astype(logits_ref.dtype)

    # Numerically-stable exact softmax over the class axis (no padded lanes).
    m = jnp.max(logits, axis=1, keepdims=True)
    e = jnp.exp(logits - m)
    denom = jnp.sum(e, axis=1, keepdims=True)
    probas_ref[...] = (e / denom).astype(probas_ref.dtype)


def single_layer_nn(x, weight, bias, *, normalize=False):
    """Forward pass of SingleLayerNN.

    Args:
      x:      (batch, input_size) float array.
      weight: (num_classes, input_size) — PyTorch Linear weight layout.
      bias:   (num_classes,)
      normalize: whether to L2-normalize x along the last axis first.

    Returns:
      (logits, probas), both (batch, num_classes) float32.
    """
    batch, input_size = x.shape
    num_classes = weight.shape[0]

    # Tiny one-time reshapes (negligible HBM traffic): W -> (K, N), bias -> (1, N).
    w_t = weight.astype(jnp.float32).T
    b_2d = bias.astype(jnp.float32).reshape(1, num_classes)

    # Batch tile: multiple of 8 sublanes; >= 2 grid steps once batch > 8 so the
    # "parallel" axis can shard across v7x's two TensorCores; capped at 1024 to
    # amortize per-step overhead while staying far under VMEM limits everywhere.
    tb = min(1024, max(8, _round_up(pl.cdiv(batch, 2), 8)))
    grid = (pl.cdiv(batch, tb),)

    kernel = functools.partial(_single_layer_nn_kernel, normalize=normalize)

    out_shapes = (
        jax.ShapeDtypeStruct((batch, num_classes), jnp.float32),
        jax.ShapeDtypeStruct((batch, num_classes), jnp.float32),
    )

    logits, probas = pl.pallas_call(
        kernel,
        out_shape=out_shapes,
        grid=grid,
        in_specs=[
            # x: streamed over batch tiles; last dim == full array dim (legal).
            pl.BlockSpec((tb, input_size), lambda i: (i, 0)),
            # W: loaded once, VMEM-resident.
            pl.BlockSpec((input_size, num_classes), lambda i: (0, 0)),
            # bias: resident.
            pl.BlockSpec((1, num_classes), lambda i: (0, 0)),
        ],
        out_specs=(
            pl.BlockSpec((tb, num_classes), lambda i: (i, 0)),
            pl.BlockSpec((tb, num_classes), lambda i: (i, 0)),
        ),
        compiler_params=pltpu.CompilerParams(
            # batch tiles are independent -> megacore sharding on v7x.
            dimension_semantics=("parallel",),
        ),
    )(x, w_t, b_2d)

    return logits, probas
    # TODO(synk): add a K-reduction grid axis (accumulate x@W and sum(x*x) across
    # K tiles under pl.when) if input_size ever grows beyond a few thousand.


if __name__ == "__main__":
    # Small, deterministic setup consistent with the module's forward:
    # x: (batch, input_size), Linear(input_size, num_classes), bias = 0.
    batch, input_size, num_classes = 8, 32, 16

    key = jax.random.PRNGKey(0)
    kx, kw = jax.random.split(key)

    x = jax.random.normal(kx, (batch, input_size), dtype=jnp.float32)
    bound = 1.0 / jnp.sqrt(jnp.float32(input_size))
    weight = jax.random.uniform(
        kw, (num_classes, input_size), dtype=jnp.float32, minval=-bound, maxval=bound
    )
    bias = jnp.zeros((num_classes,), dtype=jnp.float32)

    # normalize=True path (matches the module when normalize is enabled).
    logits, probas = single_layer_nn(x, weight, bias, normalize=True)
    jax.block_until_ready((logits, probas))

    xn = x / jnp.linalg.norm(x, axis=-1, keepdims=True)
    ref_logits = xn @ weight.T + bias
    ref_probas = jax.nn.softmax(ref_logits, axis=1)
    assert logits.shape == (batch, num_classes)
    assert probas.shape == (batch, num_classes)
    assert jnp.allclose(logits, ref_logits, atol=1e-5, rtol=1e-5)
    assert jnp.allclose(probas, ref_probas, atol=1e-5, rtol=1e-5)
    assert jnp.allclose(jnp.sum(probas, axis=1), 1.0, atol=1e-5)

    # normalize=False path.
    logits2, probas2 = single_layer_nn(x, weight, bias, normalize=False)
    jax.block_until_ready((logits2, probas2))
    ref_logits2 = x @ weight.T + bias
    ref_probas2 = jax.nn.softmax(ref_logits2, axis=1)
    assert jnp.allclose(logits2, ref_logits2, atol=1e-5, rtol=1e-5)
    assert jnp.allclose(probas2, ref_probas2, atol=1e-5, rtol=1e-5)
    assert jnp.allclose(jnp.sum(probas2, axis=1), 1.0, atol=1e-5)

    print("KERNEL_OK")
</pallas_src>

<mosaic_0001>
module attributes {stable_mosaic.version = 11 : i64} {
  func.func @_single_layer_nn_kernel(%arg0: i32, %arg1: memref<8x32xf32, #tpu.memory_space<vmem>>, %arg2: memref<32x16xf32, #tpu.memory_space<vmem>>, %arg3: memref<1x16xf32, #tpu.memory_space<vmem>>, %arg4: memref<8x16xf32, #tpu.memory_space<vmem>>, %arg5: memref<8x16xf32, #tpu.memory_space<vmem>>) attributes {dimension_semantics = [#tpu.dimension_semantics<parallel>], iteration_bounds = array<i64: 1>, scalar_prefetch = 0 : i64, scratch_operands = 0 : i64, tpu.core_type = #tpu.core_type<tc>, window_params = [{transform_indices = @transform_0, window_bounds = array<i64: 8, 32>}, {pipeline_mode = #tpu.pipeline_mode<synchronous>, transform_indices = @transform_1, window_bounds = array<i64: 32, 16>}, {pipeline_mode = #tpu.pipeline_mode<synchronous>, transform_indices = @transform_2, window_bounds = array<i64: 1, 16>}, {transform_indices = @transform_3, window_bounds = array<i64: 8, 16>}, {transform_indices = @transform_4, window_bounds = array<i64: 8, 16>}]} {
    %c0 = arith.constant 0 : index
    %c0_0 = arith.constant 0 : index
    %0 = vector.load %arg1[%c0, %c0_0] : memref<8x32xf32, #tpu.memory_space<vmem>>, vector<8x32xf32>
    %c0_1 = arith.constant 0 : index
    %c0_2 = arith.constant 0 : index
    %1 = vector.load %arg2[%c0_1, %c0_2] : memref<32x16xf32, #tpu.memory_space<vmem>>, vector<32x16xf32>
    %cst = arith.constant dense<0.000000e+00> : vector<8x16xf32>
    %2 = tpu.matmul %0, %1, %cst {dimension_numbers = #tpu.dot_dimension_numbers<[1], [0], [0], [1], [0, 0, 1, 1], [], []>} : vector<8x32xf32>, vector<32x16xf32>, vector<8x16xf32> -> vector<8x16xf32>
    %3 = arith.mulf %0, %0 : vector<8x32xf32>
    %cst_3 = arith.constant dense<0.000000e+00> : vector<8xf32>
    %4 = vector.multi_reduction <add>, %3, %cst_3 [1] : vector<8x32xf32> to vector<8xf32>
    %5 = vector.shape_cast %4 : vector<8xf32> to vector<8x1xf32>
    %6 = math.rsqrt %5 : vector<8x1xf32>
    %7 = vector.broadcast %6 : vector<8x1xf32> to vector<8x16xf32>
    %8 = arith.mulf %2, %7 : vector<8x16xf32>
    %c0_4 = arith.constant 0 : index
    %c0_5 = arith.constant 0 : index
    %9 = vector.load %arg3[%c0_4, %c0_5] : memref<1x16xf32, #tpu.memory_space<vmem>>, vector<1x16xf32>
    %10 = vector.broadcast %9 : vector<1x16xf32> to vector<8x16xf32>
    %11 = arith.addf %8, %10 : vector<8x16xf32>
    %c0_6 = arith.constant 0 : index
    %c0_7 = arith.constant 0 : index
    %12 = vector.load %arg4[%c0_6, %c0_7] : memref<8x16xf32, #tpu.memory_space<vmem>>, vector<8x16xf32>
    tpu.vector_store %arg4[%c0_6, %c0_7], %11 {strides = array<i32>} : memref<8x16xf32, #tpu.memory_space<vmem>>, vector<8x16xf32>,
    %cst_8 = arith.constant dense<0xFF800000> : vector<8xf32>
    %13 = vector.multi_reduction <maximumf>, %11, %cst_8 [1] : vector<8x16xf32> to vector<8xf32>
    %14 = vector.shape_cast %13 : vector<8xf32> to vector<8x1xf32>
    %15 = vector.broadcast %14 : vector<8x1xf32> to vector<8x16xf32>
    %16 = arith.subf %11, %15 : vector<8x16xf32>
    %17 = math.exp %16 : vector<8x16xf32>
    %cst_9 = arith.constant dense<0.000000e+00> : vector<8xf32>
    %18 = vector.multi_reduction <add>, %17, %cst_9 [1] : vector<8x16xf32> to vector<8xf32>
    %19 = vector.shape_cast %18 : vector<8xf32> to vector<8x1xf32>
    %20 = vector.broadcast %19 : vector<8x1xf32> to vector<8x16xf32>
    %21 = arith.divf %17, %20 : vector<8x16xf32>
    %c0_10 = arith.constant 0 : index
    %c0_11 = arith.constant 0 : index
    %22 = vector.load %arg5[%c0_10, %c0_11] : memref<8x16xf32, #tpu.memory_space<vmem>>, vector<8x16xf32>
    tpu.vector_store %arg5[%c0_10, %c0_11], %21 {strides = array<i32>} : memref<8x16xf32, #tpu.memory_space<vmem>>, vector<8x16xf32>,
    return
  }
  func.func @transform_0(%arg0: i32) -> (i32, i32) {
    %c0_i32 = arith.constant 0 : i32
    %c0_i32_0 = arith.constant 0 : i32
    return %arg0, %c0_i32 : i32, i32
  }
  func.func @transform_1(%arg0: i32) -> (i32, i32) {
    %c0_i32 = arith.constant 0 : i32
    %c0_i32_0 = arith.constant 0 : i32
    %c0_i32_1 = arith.constant 0 : i32
    return %c0_i32, %c0_i32_0 : i32, i32
  }
  func.func @transform_2(%arg0: i32) -> (i32, i32) {
    %c0_i32 = arith.constant 0 : i32
    %c0_i32_0 = arith.constant 0 : i32
    %c0_i32_1 = arith.constant 0 : i32
    return %c0_i32, %c0_i32_0 : i32, i32
  }
  func.func @transform_3(%arg0: i32) -> (i32, i32) {
    %c0_i32 = arith.constant 0 : i32
    %c0_i32_0 = arith.constant 0 : i32
    return %arg0, %c0_i32 : i32, i32
  }
  func.func @transform_4(%arg0: i32) -> (i32, i32) {
    %c0_i32 = arith.constant 0 : i32
    %c0_i32_0 = arith.constant 0 : i32
    return %arg0, %c0_i32 : i32, i32
  }
}

</mosaic_0001>

<llo_original>
// kernel: tpu_custom_call.1
$region0: #{tpu_custom_call.1}
  #allocation0 [shape = 'u32[]', space=smem, size = 0x4, offset = 0x4, fixed_abs, tag = 'smem constant byte address 0x4 - core index']
  #allocation1 [shape = 'u32[72,128]{1,0:T(1,128)}', space=vmem, size = 0x9000, scoped, tag = 'internal scratch']
  %s0 = inlined_call_operand.vmem [shape: f32[8,32], index: 0, kind: input, shape index: {}]
  %s1 = inlined_call_operand.vmem [shape: f32[32,16], index: 1, kind: input, shape index: {}]
  %s2 = inlined_call_operand.vmem [shape: f32[1,16], index: 2, kind: input, shape index: {}]
  %s3 = inlined_call_operand.hbm [shape: f32[8,16], index: 3, kind: output, shape index: {0}]
  %s4 = inlined_call_operand.hbm [shape: f32[8,16], index: 4, kind: output, shape index: {1}]
  %5 = xla_tuple %s3, %s4
  %s6 = sld [smem:[#allocation0]]
  $region30: #{tpu_custom_call.1} parent=0
    _
  %s8 = ssub.s32 1, %s6
  %s9 = scalar_select 0, %s8, %s6
  $region1: #{tpu_custom_call.1} parent=0
    #allocation2 [shape = 'u8[4096]{0}', space=vmem, size = 0x1000, scoped, tag = 'output window, operand 0, single buffered']
    #allocation3 [shape = 's32[1]{0}', space=sflag, size = 0x4, scoped, tag = 'scoped memory for tpu_custom_call.1']
    #allocation4 [shape = 'u8[4096]{0}', space=vmem, size = 0x1000, scoped, tag = 'output window, operand 1, single buffered']
    #allocation5 [shape = 's32[1]{0}', space=sflag, size = 0x4, scoped, tag = 'scoped memory for tpu_custom_call.1']
    %10 = vsyncpa [#allocation3], 0
    %11 = vsyncpa [#allocation5], 0
    // Predicated region
    $region2: #{tpu_custom_call.1} parent=1 // pred_check
      _
    $region3: #{tpu_custom_call.1} parent=1 // pred_check_branch
      %13 = sbr.rel (0) target = $region5
    $region4: #{tpu_custom_call.1} parent=1 // pred_region
      _
    $region5: #{tpu_custom_call.1} parent=1 // pred_fallthru
      _
    // Predicated region
    $region6: #{tpu_custom_call.1} parent=1 // pred_check
      _
    $region7: #{tpu_custom_call.1} parent=1 // pred_check_branch
      %15 = sbr.rel (0) target = $region9
    $region8: #{tpu_custom_call.1} parent=1 // pred_region
      _
    $region9: #{tpu_custom_call.1} parent=1 // pred_fallthru
      _
    // Predicated region
    $region10: #{tpu_custom_call.1} parent=1 // pred_check
      _
    $region11: #{tpu_custom_call.1} parent=1 // pred_check_branch
      %17 = sbr.rel (0) target = $region13
    $region12: #{tpu_custom_call.1} parent=1 // pred_region
      _
    $region13: #{tpu_custom_call.1} parent=1 // pred_fallthru
      _
    %v18 = vld [vmem:[%s0] sm:$0xff]
    %v19 = vld [vmem:[%s1] sm:$0xff]
    %v20 = vld [vmem:[%s1 + $0x8] sm:$0xff]
    %v21 = vld [vmem:[%s1 + $0x10] sm:$0xff]
    %v22 = vld [vmem:[%s1 + $0x18] sm:$0xff]
    %vm23 = vcmask 261120
    %v25 = vsel %vm23, %v18, 0
    %27 = vmatpush.msra.mxu0 0.0
    %28 = vmatpush.msra.mxu0 0.0
    %29 = vmatpush.msra.mxu0 0.0
    %30 = vmatpush.msra.mxu0 0.0
    %31 = vmatpush.msra.mxu0 0.0
    %32 = vmatpush.msra.mxu0 0.0
    %33 = vmatpush.msra.mxu0 0.0
    %34 = vmatpush.msra.mxu0 0.0
    %35 = vmatpush.msra.mxu0 0.0
    %36 = vmatpush.msra.mxu0 0.0
    %37 = vmatpush.msra.mxu0 0.0
    %38 = vmatpush.msra.mxu0 0.0
    %39 = vmatpush.msra.mxu0 %v22
    %40 = vmatpush.msra.mxu0 %v21
    %41 = vmatpush.msra.mxu0 %v20
    %42 = vmatpush.msra.mxu0 %v19
    %43 = vmatmul.f32.gmra.mxu0 %v25
    %v44 = vpop.f32.mrf.mxu0
    %v45 = vadd.f32 0.0, %v44
    %46 = vdwg.mxu0
    %v47 = vmul.f32 %v18, %v18
    %v48 = vsel %vm23, %v47, 0.0
    %49 = vadd.xlane.f32.xlu0 %v48
    %v50 = vpop.xlane.xlu0 %49
    %v51 = vrsqrt.pop %v50
    %v52 = vmul.f32 %v51, %v50
    %v53 = vmul.f32 %v52, %v51
    %v54 = vmul.f32 0.5, %v53
    %v55 = vsub.f32 1.5, %v54
    %v56 = vmul.f32 %v51, %v55
    %vm57 = vweird.f32 %v50
    %vm58 = vweird.f32 %v51
    %vm59 = vmor %vm57, %vm58
    %v60 = vsel %vm59, %v51, %v56
    %v61 = vmul.f32 %v45, %v60
    %v62 = vld [vmem:[%s2] sm:$0x1]
    %v64 = vperm.slane %v62, 0
    %v66 = vadd.f32 %v61, %v64
    %vm67 = vcmask 130048
    %68 = vst.msk [vmem:[#allocation2] sm:$0xff] %vm67, %v66
    %v69 = vsel %vm67, %v66, -inf
    %70 = vmax.xlane.f32.xlu0 %v69
    %v71 = vpop.xlane.xlu0 %70
    %v72 = vsub.f32 %v66, %v71
    %v73 = vmul.f32 %v72, 1.442695
    %v74 = vpow.pop %v73
    %v75 = vsel %vm67, %v74, 0.0
    %76 = vadd.xlane.f32.xlu0 %v75
    %v77 = vpop.xlane.xlu0 %76
    %v78 = vrcp.pop %v77
    %v79 = vmul.f32 %v77, %v78
    %v80 = vsub.f32 1.0, %v79
    %v81 = vmul.f32 %v78, %v80
    %v82 = vadd.f32 %v78, %v81
    %vm83 = vweird.f32 %v77
    %vm84 = vweird.f32 %v78
    %vm85 = vmor %vm83, %vm84
    %v86 = vsel %vm85, %v78, %v82
    %v87 = vand.u32 2147483647, %v77
    %vm88 = vcmp.eq.f32.partialorder %v87, 8.507059e+37
    %v89 = vand.u32 %v77, 2147483648
    %v90 = vor.u32 1.1754944e-38, %v89
    %v91 = vsel %vm88, %v90, %v86
    %v92 = vmul.f32 %v74, %v91
    %93 = vst.msk [vmem:[#allocation4] sm:$0xff] %vm67, %v92
    // Predicated region
    $region14: #{tpu_custom_call.1} parent=1 // pred_check
      _
    $region15: #{tpu_custom_call.1} parent=1 // pred_check_branch
      %95 = sbr.rel (0) target = $region17
    $region16: #{tpu_custom_call.1} parent=1 // pred_region
      %97 = vsyncadd [#allocation3], 0
      %s99 = sshll.u32 [#allocation2], 4
      %s100 = int_to_ptr.vmem [resolvable:$true] %s99
      %s101 = sshll.u32 %s3, 4
      %s102 = int_to_ptr.hbm [resolvable:$true] %s101
      %104 = dma.vmem_to_hbm [thread:$0]  %s100, 128, %s102, [#allocation3]
    $region17: #{tpu_custom_call.1} parent=1 // pred_fallthru
      _
    // Predicated region
    $region18: #{tpu_custom_call.1} parent=1 // pred_check
      _
    $region19: #{tpu_custom_call.1} parent=1 // pred_check_branch
      %106 = sbr.rel (0) target = $region21
    $region20: #{tpu_custom_call.1} parent=1 // pred_region
      %108 = vsyncadd [#allocation5], 0
      %s110 = sshll.u32 [#allocation4], 4
      %s111 = int_to_ptr.vmem [resolvable:$true] %s110
      %s112 = sshll.u32 %s4, 4
      %s113 = int_to_ptr.hbm [resolvable:$true] %s112
      %115 = dma.vmem_to_hbm [thread:$0]  %s111, 128, %s113, [#allocation5]
    $region21: #{tpu_custom_call.1} parent=1 // pred_fallthru
      _
    // Predicated region
    $region22: #{tpu_custom_call.1} parent=1 // pred_check
      _
    $region23: #{tpu_custom_call.1} parent=1 // pred_check_branch
      %117 = sbr.rel (0) target = $region25
    $region24: #{tpu_custom_call.1} parent=1 // pred_region
      %119 = dma.done [#allocation3], 128
    $region25: #{tpu_custom_call.1} parent=1 // pred_fallthru
      _
    // Predicated region
    $region26: #{tpu_custom_call.1} parent=1 // pred_check
      _
    $region27: #{tpu_custom_call.1} parent=1 // pred_check_branch
      %121 = sbr.rel (0) target = $region29
    $region28: #{tpu_custom_call.1} parent=1 // pred_region
      %123 = dma.done [#allocation5], 128
    $region29: #{tpu_custom_call.1} parent=1 // pred_fallthru
      _
    %124 = vsyncpa [#allocation3], 1
    %125 = vsyncpa [#allocation5], 1

</llo_original>
